<compile_context>
chip_gen: v5e
topology: v5e:2x2
jax: 0.10.0
libtpu: 0.0.40
codegen_flags: <defaults>
</compile_context>

<pallas_src>
import functools
import math

import jax
import jax.numpy as jnp
from jax.experimental import pallas as pl
from jax.experimental.pallas import tpu as pltpu


def _round_up(x, m):
    return ((x + m - 1) // m) * m


def _cdiv(a, b):
    return (a + b - 1) // b


def _apply_activation(y, acti_fn):
    if acti_fn == 'none':
        return y
    elif acti_fn == 'relu':
        return jnp.maximum(y, 0.0)
    elif acti_fn == 'lrelu':
        # nn.LeakyReLU() default negative_slope = 0.01
        return jnp.where(y >= 0.0, y, 0.01 * y)
    elif acti_fn == 'sigmoid':
        return jax.nn.sigmoid(y)
    elif acti_fn == 'tanh':
        return jnp.tanh(y)
    else:
        raise Exception('Unsupported activation function: ' + str(acti_fn))


def _linear_block_kernel(x_ref, w_ref, b_ref, o_ref, *scratch, acti_fn):
    # x_ref: (tm, tk)  w_ref: (tk, tn)  b_ref: (1, tn)  o_ref: (tm, tn)
    # scratch: () if o_ref is f32 (accumulate in place), else (acc_ref,) f32.
    acc_ref = scratch[0] if scratch else o_ref
    k = pl.program_id(2)

    @pl.when(k == 0)
    def _():
        acc_ref[...] = jnp.zeros_like(acc_ref)

    # MXU-native (tm, tk) x (tk, tn) -> (tm, tn), f32 accumulation.
    acc_ref[...] += jnp.dot(x_ref[...], w_ref[...],
                            preferred_element_type=jnp.float32)

    @pl.when(k == pl.num_programs(2) - 1)
    def _():
        y = acc_ref[...].astype(jnp.float32) + b_ref[...].astype(jnp.float32)
        y = _apply_activation(y, acti_fn)
        o_ref[...] = y.astype(o_ref.dtype)


def _choose_nk_tiles(n_out, n_in, batch_hint, tm, tn, tk):
    """Pick lane-aligned (tn, tk) for a given weight, independent of x."""
    Np128 = _round_up(n_out, 128)
    Kp128 = _round_up(n_in, 128)
    Bp8 = _round_up(max(int(batch_hint), 1), 8)
    tn = min(tn, Np128)
    tk = min(tk, Kp128)
    tm_eff = min(tm, Bp8)
    # Guarantee >=2 parallel grid tiles when possible so both v7x TensorCores
    # get work (dimension_semantics 'parallel' on M/N only helps with >=2 tiles).
    if _cdiv(Bp8, tm_eff) * _cdiv(Np128, tn) == 1 and Np128 >= 256:
        tn = _round_up(Np128 // 2, 128)
    return tn, tk


def prepare_linear_block_params(weight, bias=None, *, batch_hint=8,
                                tm=512, tn=512, tk=1024, compute_dtype=None):
    """One-time pad + transpose of the (parameter) weight/bias.

    weight: (n_out, n_in) PyTorch nn.Linear layout.
    Returns a dict holding the (Kp, Np) MXU-native weight, padded bias row and
    the tile sizes; reuse it across calls to amortize the HBM copy.
    """
    n_out, n_in = weight.shape
    if bias is None:
        bias = jnp.zeros((n_out,), weight.dtype)
    tn, tk = _choose_nk_tiles(n_out, n_in, batch_hint, tm, tn, tk)
    Np = _round_up(n_out, tn)
    Kp = _round_up(n_in, tk)
    # Fold the transpose into the padding copy: one pass over the weight, done
    # once per parameter set rather than once per call.
    w_kn = jnp.pad(weight.T, ((0, Kp - n_in), (0, Np - n_out)))
    if compute_dtype is not None:
        w_kn = w_kn.astype(compute_dtype)
    b_row = jnp.pad(bias, (0, Np - n_out)).reshape(1, Np).astype(jnp.float32)
    return dict(w_kn=w_kn, b_row=b_row, n_in=n_in, n_out=n_out,
                tm=tm, tn=tn, tk=tk, compute_dtype=compute_dtype)


def linear_block_prepared(x, params, acti_fn='none'):
    """Forward pass using pre-padded / pre-transposed parameters."""
    B, n_in = x.shape
    assert n_in == params['n_in'], 'x feature dim does not match weight'
    w_kn, b_row = params['w_kn'], params['b_row']
    n_out, tn, tk = params['n_out'], params['tn'], params['tk']
    Kp, Np = w_kn.shape
    compute_dtype = params['compute_dtype']

    tm = min(params['tm'], _round_up(B, 8))
    Bp = _round_up(B, tm)

    in_dtype = compute_dtype if compute_dtype is not None else x.dtype
    xp = x
    if Bp != B or Kp != n_in:
        xp = jnp.pad(x, ((0, Bp - B), (0, Kp - n_in)))
    if xp.dtype != in_dtype:
        xp = xp.astype(in_dtype)

    out_dtype = x.dtype
    use_scratch = jnp.dtype(out_dtype) != jnp.dtype(jnp.float32)
    grid = (Bp // tm, Np // tn, Kp // tk)
    m_tiles, n_tiles = grid[0], grid[1]

    # Cost estimate reflecting blocked HBM traffic (x re-read n_tiles times,
    # weight re-read m_tiles times).
    in_bytes = jnp.dtype(in_dtype).itemsize
    out_bytes = jnp.dtype(out_dtype).itemsize
    trans = B * n_out if acti_fn in ('sigmoid', 'tanh') else 0
    cost = pl.CostEstimate(
        flops=2 * B * n_in * n_out,
        transcendentals=trans,
        bytes_accessed=int(Bp * Kp * in_bytes * n_tiles
                           + Kp * Np * in_bytes * m_tiles
                           + Bp * Np * out_bytes
                           + Np * 4 * m_tiles))

    # Double-buffered inputs + double-buffered output (+ optional accumulator),
    # plus slack.  Explicit limit so big tiles fit inside v5e's 16-MiB scoped
    # default; clamped well under every generation's physical VMEM.
    vmem_bytes = (2 * (tm * tk + tk * tn) * in_bytes
                  + 2 * tm * tn * out_bytes
                  + (tm * tn * 4 if use_scratch else 0)
                  + 2 * tn * 4
                  + (2 << 20))
    vmem_limit = int(min(max(vmem_bytes, 16 * 1024 * 1024), 64 * 1024 * 1024))

    kernel = functools.partial(_linear_block_kernel, acti_fn=acti_fn)

    out = pl.pallas_call(
        kernel,
        out_shape=jax.ShapeDtypeStruct((Bp, Np), out_dtype),
        grid_spec=pltpu.PrefetchScalarGridSpec(
            num_scalar_prefetch=0,
            grid=grid,
            in_specs=[
                pl.BlockSpec((tm, tk), lambda i, j, k: (i, k)),   # x
                pl.BlockSpec((tk, tn), lambda i, j, k: (k, j)),   # weight (K, N)
                pl.BlockSpec((1, tn), lambda i, j, k: (0, j)),    # bias row
            ],
            out_specs=pl.BlockSpec((tm, tn), lambda i, j, k: (i, j)),
            scratch_shapes=([pltpu.VMEM((tm, tn), jnp.float32)]
                            if use_scratch else []),
        ),
        compiler_params=pltpu.CompilerParams(
            dimension_semantics=("parallel", "parallel", "arbitrary"),
            vmem_limit_bytes=vmem_limit),
        cost_estimate=cost,
    )(xp, w_kn, b_row)

    if Bp != B or Np != n_out:
        out = out[:B, :n_out]
    return out


def linear_block(x, weight, bias=None, acti_fn='none', *,
                 tm=512, tn=512, tk=1024, compute_dtype=None):
    """Convenience wrapper: prepare params, then run the fused kernel.

    x:      (B, n_in)      float32
    weight: (n_out, n_in)  PyTorch nn.Linear layout
    bias:   (n_out,) or None
    Prefer prepare_linear_block_params(...) + linear_block_prepared(...) when
    calling repeatedly with the same weights (amortizes the pad/transpose).
    """
    params = prepare_linear_block_params(
        weight, bias, batch_hint=x.shape[0], tm=tm, tn=tn, tk=tk,
        compute_dtype=compute_dtype)
    return linear_block_prepared(x, params, acti_fn=acti_fn)


def _init_linear_params(key, n_in, n_out):
    """Deterministic init mimicking PyTorch nn.Linear default init."""
    k_w, k_b = jax.random.split(key)
    bound = 1.0 / math.sqrt(n_in)
    weight = jax.random.uniform(k_w, (n_out, n_in), jnp.float32,
                                minval=-bound, maxval=bound)
    bias = jax.random.uniform(k_b, (n_out,), jnp.float32,
                              minval=-bound, maxval=bound)
    return weight, bias


def _reference(x, weight, bias, acti_fn):
    y = x @ weight.T + bias
    return _apply_activation(y, acti_fn)


if __name__ == "__main__":
    key = jax.random.PRNGKey(0)
    k_x, k_p, k_x2, k_p2 = jax.random.split(key, 4)

    ok = True

    # Small shape consistent with the module (batch=8, n_in=32, n_out=64).
    B, n_in, n_out = 8, 32, 64
    x = jax.random.normal(k_x, (B, n_in), jnp.float32)
    weight, bias = _init_linear_params(k_p, n_in, n_out)
    # Prepare the parameters once and reuse across activations (amortized path).
    params = prepare_linear_block_params(weight, bias, batch_hint=B)
    for acti in ('none', 'relu', 'lrelu', 'sigmoid', 'tanh'):
        out = jax.block_until_ready(
            linear_block_prepared(x, params, acti_fn=acti))
        ref = _reference(x, weight, bias, acti)
        if not jnp.allclose(out, ref, atol=1e-5, rtol=1e-5):
            ok = False
            print(f"MISMATCH for activation={acti} (shape {B}x{n_in}->{n_out})")

    # Ragged shape exercising padding / tile clamping / >=2-parallel-tile split.
    B2, n_in2, n_out2 = 10, 40, 200
    x2 = jax.random.normal(k_x2, (B2, n_in2), jnp.float32)
    weight2, bias2 = _init_linear_params(k_p2, n_in2, n_out2)
    out2 = jax.block_until_ready(
        linear_block(x2, weight2, bias2, acti_fn='lrelu'))
    ref2 = _reference(x2, weight2, bias2, 'lrelu')
    if not jnp.allclose(out2, ref2, atol=1e-5, rtol=1e-5):
        ok = False
        print("MISMATCH for ragged-shape test")

    if ok:
        print("KERNEL_OK")
</pallas_src>

<mosaic_0001>
module attributes {stable_mosaic.version = 11 : i64} {
  func.func @_linear_block_kernel(%arg0: i32, %arg1: i32, %arg2: i32, %arg3: memref<8x128xf32, #tpu.memory_space<vmem>>, %arg4: memref<128x128xf32, #tpu.memory_space<vmem>>, %arg5: memref<1x128xf32, #tpu.memory_space<vmem>>, %arg6: memref<8x128xf32, #tpu.memory_space<vmem>>) attributes {dimension_semantics = [#tpu.dimension_semantics<parallel>, #tpu.dimension_semantics<parallel>, #tpu.dimension_semantics<arbitrary>], iteration_bounds = array<i64: 1, 1, 1>, scalar_prefetch = 0 : i64, scratch_operands = 0 : i64, tpu.core_type = #tpu.core_type<tc>, window_params = [{transform_indices = @transform_0, window_bounds = array<i64: 8, 128>}, {transform_indices = @transform_1, window_bounds = array<i64: 128, 128>}, {transform_indices = @transform_2, window_bounds = array<i64: 1, 128>}, {transform_indices = @transform_3, window_bounds = array<i64: 8, 128>}]} {
    %c0_i32 = arith.constant 0 : i32
    %0 = arith.cmpi eq, %arg2, %c0_i32 : i32
    %1 = arith.extui %0 : i1 to i32
    %c0_i32_0 = arith.constant 0 : i32
    %2 = arith.cmpi ne, %1, %c0_i32_0 : i32
    scf.if %2 {
      %cst_10 = arith.constant 0.000000e+00 : f32
      %12 = vector.broadcast %cst_10 : f32 to vector<8x128xf32>
      %c0_11 = arith.constant 0 : index
      %c0_12 = arith.constant 0 : index
      %13 = vector.load %arg6[%c0_11, %c0_12] : memref<8x128xf32, #tpu.memory_space<vmem>>, vector<8x128xf32>
      tpu.vector_store %arg6[%c0_11, %c0_12], %12 {strides = array<i32>} : memref<8x128xf32, #tpu.memory_space<vmem>>, vector<8x128xf32>,
    } else {
    }
    %c0 = arith.constant 0 : index
    %c0_1 = arith.constant 0 : index
    %3 = vector.load %arg6[%c0, %c0_1] : memref<8x128xf32, #tpu.memory_space<vmem>>, vector<8x128xf32>
    %c0_2 = arith.constant 0 : index
    %c0_3 = arith.constant 0 : index
    %4 = vector.load %arg3[%c0_2, %c0_3] : memref<8x128xf32, #tpu.memory_space<vmem>>, vector<8x128xf32>
    %c0_4 = arith.constant 0 : index
    %c0_5 = arith.constant 0 : index
    %5 = vector.load %arg4[%c0_4, %c0_5] : memref<128x128xf32, #tpu.memory_space<vmem>>, vector<128x128xf32>
    %cst = arith.constant dense<0.000000e+00> : vector<8x128xf32>
    %6 = tpu.matmul %4, %5, %cst {dimension_numbers = #tpu.dot_dimension_numbers<[1], [0], [0], [1], [0, 0, 1, 1], [], []>} : vector<8x128xf32>, vector<128x128xf32>, vector<8x128xf32> -> vector<8x128xf32>
    %7 = arith.addf %3, %6 : vector<8x128xf32>
    %c0_6 = arith.constant 0 : index
    %c0_7 = arith.constant 0 : index
    %8 = vector.load %arg6[%c0_6, %c0_7] : memref<8x128xf32, #tpu.memory_space<vmem>>, vector<8x128xf32>
    tpu.vector_store %arg6[%c0_6, %c0_7], %7 {strides = array<i32>} : memref<8x128xf32, #tpu.memory_space<vmem>>, vector<8x128xf32>,
    %c0_i32_8 = arith.constant 0 : i32
    %9 = arith.cmpi eq, %arg2, %c0_i32_8 : i32
    %10 = arith.extui %9 : i1 to i32
    %c0_i32_9 = arith.constant 0 : i32
    %11 = arith.cmpi ne, %10, %c0_i32_9 : i32
    scf.if %11 {
      %c0_10 = arith.constant 0 : index
      %c0_11 = arith.constant 0 : index
      %12 = vector.load %arg6[%c0_10, %c0_11] : memref<8x128xf32, #tpu.memory_space<vmem>>, vector<8x128xf32>
      %c0_12 = arith.constant 0 : index
      %c0_13 = arith.constant 0 : index
      %13 = vector.load %arg5[%c0_12, %c0_13] : memref<1x128xf32, #tpu.memory_space<vmem>>, vector<1x128xf32>
      %14 = vector.broadcast %13 : vector<1x128xf32> to vector<8x128xf32>
      %15 = arith.addf %12, %14 : vector<8x128xf32>
      %c0_14 = arith.constant 0 : index
      %c0_15 = arith.constant 0 : index
      %16 = vector.load %arg6[%c0_14, %c0_15] : memref<8x128xf32, #tpu.memory_space<vmem>>, vector<8x128xf32>
      tpu.vector_store %arg6[%c0_14, %c0_15], %15 {strides = array<i32>} : memref<8x128xf32, #tpu.memory_space<vmem>>, vector<8x128xf32>,
    } else {
    }
    return
  }
  func.func @transform_0(%arg0: i32, %arg1: i32, %arg2: i32) -> (i32, i32) {
    %c0_i32 = arith.constant 0 : i32
    return %arg0, %arg2 : i32, i32
  }
  func.func @transform_1(%arg0: i32, %arg1: i32, %arg2: i32) -> (i32, i32) {
    %c0_i32 = arith.constant 0 : i32
    return %arg2, %arg1 : i32, i32
  }
  func.func @transform_2(%arg0: i32, %arg1: i32, %arg2: i32) -> (i32, i32) {
    %c0_i32 = arith.constant 0 : i32
    %c0_i32_0 = arith.constant 0 : i32
    return %c0_i32, %arg1 : i32, i32
  }
  func.func @transform_3(%arg0: i32, %arg1: i32, %arg2: i32) -> (i32, i32) {
    %c0_i32 = arith.constant 0 : i32
    return %arg0, %arg1 : i32, i32
  }
}

</mosaic_0001>

<llo_original>
// kernel: tpu_custom_call.1
$region0: #{tpu_custom_call.1}
  #allocation0 [shape = 'u32[]', space=smem, size = 0x4, offset = 0x4, fixed_abs, tag = 'smem constant byte address 0x4 - core index']
  #allocation1 [shape = 'u32[72,128]{1,0:T(1,128)}', space=vmem, size = 0x9000, scoped, tag = 'internal scratch']
  %s0 = inlined_call_operand.hbm [shape: f32[8,128], index: 0, kind: input, shape index: {}]
  %s1 = inlined_call_operand.hbm [shape: f32[128,128], index: 1, kind: input, shape index: {}]
  %s2 = inlined_call_operand.vmem [shape: f32[1,128], index: 2, kind: input, shape index: {}]
  %s3 = inlined_call_operand.hbm [shape: f32[8,128], index: 3, kind: output, shape index: {}]
  %s4 = sld [smem:[#allocation0]]
  $region38: #{tpu_custom_call.1} parent=0
    _
  %s6 = ssub.s32 1, %s4
  %s7 = scalar_select 0, %s6, %s4
  $region1: #{tpu_custom_call.1} parent=0
    #allocation2 [shape = 'u8[4096]{0}', space=vmem, size = 0x1000, scoped, tag = 'input window, operand 0, single buffered']
    #allocation3 [shape = 's32[1]{0}', space=sflag, size = 0x4, scoped, tag = 'scoped memory for tpu_custom_call.1']
    #allocation4 [shape = 's32[1]{0}', space=sflag, size = 0x4, scoped, tag = 'scoped memory for tpu_custom_call.1']
    #allocation5 [shape = 'u8[65536]{0}', space=vmem, size = 0x10000, scoped, tag = 'input window, operand 1, single buffered']
    #allocation6 [shape = 's32[1]{0}', space=sflag, size = 0x4, scoped, tag = 'scoped memory for tpu_custom_call.1']
    #allocation7 [shape = 'u8[4096]{0}', space=vmem, size = 0x1000, scoped, tag = 'output window, operand 0, single buffered']
    %8 = vsyncpa [#allocation3], 0
    %9 = vsyncpa [#allocation6], 0
    %10 = vsyncpa [#allocation4], 0
    // Predicated region
    $region2: #{tpu_custom_call.1} parent=1 // pred_check
      _
    $region3: #{tpu_custom_call.1} parent=1 // pred_check_branch
      %12 = sbr.rel (0) target = $region5
    $region4: #{tpu_custom_call.1} parent=1 // pred_region
      %14 = vsyncadd [#allocation3], 0
      %s16 = sshll.u32 %s0, 4
      %s17 = int_to_ptr.hbm [resolvable:$true] %s16
      %s18 = sshll.u32 [#allocation2], 4
      %s19 = int_to_ptr.vmem [resolvable:$true] %s18
      %21 = dma.hbm_to_vmem [thread:$0]  %s17, 128, %s19, [#allocation3]
    $region5: #{tpu_custom_call.1} parent=1 // pred_fallthru
      _
    // Predicated region
    $region6: #{tpu_custom_call.1} parent=1 // pred_check
      _
    $region7: #{tpu_custom_call.1} parent=1 // pred_check_branch
      %23 = sbr.rel (0) target = $region9
    $region8: #{tpu_custom_call.1} parent=1 // pred_region
      %25 = vsyncadd [#allocation6], 0
      %s26 = sshll.u32 %s1, 4
      %s27 = int_to_ptr.hbm [resolvable:$true] %s26
      %s28 = sshll.u32 [#allocation5], 4
      %s29 = int_to_ptr.vmem [resolvable:$true] %s28
      %34 = dma.hbm_to_vmem [thread:$0]  %s27, 2048, %s29, [#allocation6], 128, 128, 8
    $region9: #{tpu_custom_call.1} parent=1 // pred_fallthru
      _
    // Predicated region
    $region10: #{tpu_custom_call.1} parent=1 // pred_check
      _
    $region11: #{tpu_custom_call.1} parent=1 // pred_check_branch
      %36 = sbr.rel (0) target = $region13
    $region12: #{tpu_custom_call.1} parent=1 // pred_region
      _
    $region13: #{tpu_custom_call.1} parent=1 // pred_fallthru
      _
    // Predicated region
    $region14: #{tpu_custom_call.1} parent=1 // pred_check
      _
    $region15: #{tpu_custom_call.1} parent=1 // pred_check_branch
      %38 = sbr.rel (0) target = $region17
    $region16: #{tpu_custom_call.1} parent=1 // pred_region
      %40 = dma.done [#allocation3], 128
    $region17: #{tpu_custom_call.1} parent=1 // pred_fallthru
      _
    // Predicated region
    $region18: #{tpu_custom_call.1} parent=1 // pred_check
      _
    $region19: #{tpu_custom_call.1} parent=1 // pred_check_branch
      %42 = sbr.rel (0) target = $region21
    $region20: #{tpu_custom_call.1} parent=1 // pred_region
      %44 = dma.done [#allocation6], 2048
    $region21: #{tpu_custom_call.1} parent=1 // pred_fallthru
      _
    %p45 = scmp.eq.s32.totalorder 0, 0
    // Predicated region
    $region22: #{tpu_custom_call.1} parent=1 // pred_check
      %p46 = pneg %p45
    $region23: #{tpu_custom_call.1} parent=1 // pred_check_branch
      %48 = sbr.rel (%p46) target = $region25
    $region24: #{tpu_custom_call.1} parent=1 // pred_region
      %49 = vst [vmem:[#allocation7] sm:$0xff] 0.0
    $region25: #{tpu_custom_call.1} parent=1 // pred_fallthru
      _
    %v50 = vld [vmem:[#allocation7] sm:$0xff]
    %v51 = vld [vmem:[#allocation2] sm:$0xff]
    %v52 = vld [vmem:[#allocation5] sm:$0xff]
    %v53 = vld [vmem:[#allocation5 + $0x8] sm:$0xff]
    %v54 = vld [vmem:[#allocation5 + $0x10] sm:$0xff]
    %v55 = vld [vmem:[#allocation5 + $0x18] sm:$0xff]
    %v56 = vld [vmem:[#allocation5 + $0x20] sm:$0xff]
    %v57 = vld [vmem:[#allocation5 + $0x28] sm:$0xff]
    %v58 = vld [vmem:[#allocation5 + $0x30] sm:$0xff]
    %v59 = vld [vmem:[#allocation5 + $0x38] sm:$0xff]
    %v60 = vld [vmem:[#allocation5 + $0x40] sm:$0xff]
    %v61 = vld [vmem:[#allocation5 + $0x48] sm:$0xff]
    %v62 = vld [vmem:[#allocation5 + $0x50] sm:$0xff]
    %v63 = vld [vmem:[#allocation5 + $0x58] sm:$0xff]
    %v64 = vld [vmem:[#allocation5 + $0x60] sm:$0xff]
    %v65 = vld [vmem:[#allocation5 + $0x68] sm:$0xff]
    %v66 = vld [vmem:[#allocation5 + $0x70] sm:$0xff]
    %v67 = vld [vmem:[#allocation5 + $0x78] sm:$0xff]
    %68 = vmatpush.msra.mxu0 %v67
    %69 = vmatpush.msra.mxu0 %v66
    %70 = vmatpush.msra.mxu0 %v65
    %71 = vmatpush.msra.mxu0 %v64
    %72 = vmatpush.msra.mxu0 %v63
    %73 = vmatpush.msra.mxu0 %v62
    %74 = vmatpush.msra.mxu0 %v61
    %75 = vmatpush.msra.mxu0 %v60
    %76 = vmatpush.msra.mxu0 %v59
    %77 = vmatpush.msra.mxu0 %v58
    %78 = vmatpush.msra.mxu0 %v57
    %79 = vmatpush.msra.mxu0 %v56
    %80 = vmatpush.msra.mxu0 %v55
    %81 = vmatpush.msra.mxu0 %v54
    %82 = vmatpush.msra.mxu0 %v53
    %83 = vmatpush.msra.mxu0 %v52
    %84 = vmatmul.f32.gmra.mxu0 %v51
    %v85 = vpop.f32.mrf.mxu0
    %v86 = vadd.f32 0.0, %v85
    %87 = vdwg.mxu0
    %v88 = vadd.f32 %v50, %v86
    %89 = vst [vmem:[#allocation7] sm:$0xff] %v88
    // Predicated region
    $region26: #{tpu_custom_call.1} parent=1 // pred_check
      %p90 = pneg %p45
    $region27: #{tpu_custom_call.1} parent=1 // pred_check_branch
      %92 = sbr.rel (%p90) target = $region29
    $region28: #{tpu_custom_call.1} parent=1 // pred_region
      %v93 = vld [vmem:[#allocation7] sm:$0xff]
      %v94 = vld [vmem:[%s2] sm:$0x1]
      %v96 = vperm.slane %v94, 0
      %v98 = vadd.f32 %v93, %v96
      %99 = vst [vmem:[#allocation7] sm:$0xff] %v98
    $region29: #{tpu_custom_call.1} parent=1 // pred_fallthru
      _
    // Predicated region
    $region30: #{tpu_custom_call.1} parent=1 // pred_check
      _
    $region31: #{tpu_custom_call.1} parent=1 // pred_check_branch
      %101 = sbr.rel (0) target = $region33
    $region32: #{tpu_custom_call.1} parent=1 // pred_region
      %103 = vsyncadd [#allocation4], 0
      %s105 = sshll.u32 [#allocation7], 4
      %s106 = int_to_ptr.vmem [resolvable:$true] %s105
      %s107 = sshll.u32 %s3, 4
      %s108 = int_to_ptr.hbm [resolvable:$true] %s107
      %110 = dma.vmem_to_hbm [thread:$0]  %s106, 128, %s108, [#allocation4]
    $region33: #{tpu_custom_call.1} parent=1 // pred_fallthru
      _
    // Predicated region
    $region34: #{tpu_custom_call.1} parent=1 // pred_check
      _
    $region35: #{tpu_custom_call.1} parent=1 // pred_check_branch
      %112 = sbr.rel (0) target = $region37
    $region36: #{tpu_custom_call.1} parent=1 // pred_region
      %114 = dma.done [#allocation4], 128
    $region37: #{tpu_custom_call.1} parent=1 // pred_fallthru
      _
    %115 = vsyncpa [#allocation3], 1
    %116 = vsyncpa [#allocation6], 1
    %117 = vsyncpa [#allocation4], 1

</llo_original>
